<compile_context>
chip_gen: v5e
topology: v5e:2x2
jax: 0.10.0
libtpu: 0.0.40
codegen_flags: <defaults>
</compile_context>

<pallas_src>
import jax
import jax.numpy as jnp
from jax.experimental import pallas as pl
from jax.experimental.pallas import tpu as pltpu

LN_EPS = 1e-5

_MAX_ROW_TILE = 512                      # row-tile target (v5e: drop to 256 if vst-bound)
_NTILED_MAX_ROW_TILE = 256               # smaller row tile when the weight is N-tiled
_VMEM_CAP_BYTES = 48 * 1024 * 1024       # leave headroom below v7x's 64 MiB / TC
_FULL_WEIGHT_VMEM_BUDGET = 40 * 1024 * 1024
_BF16_MIN_DIM = 1024                     # matmul compute-bound threshold (v6e/v7x)


def _cdiv(a, b):
    return (a + b - 1) // b


def _round_up(n, m):
    return ((n + m - 1) // m) * m


def _pick_row_tile(rows, max_tile):
    """Divisor-aware row tile: bounds ragged waste to < 8 rows per tile and
    guarantees >= 2 grid steps whenever rows >= 16 (v7x has 2 TensorCores)."""
    num_tiles = _cdiv(rows, max_tile)
    if rows >= 16:
        num_tiles = max(num_tiles, 2)
    return max(8, _round_up(_cdiv(rows, num_tiles), 8))


# --------------------------------------------------------------------------
# Kernel 1: resident (D, D) weight, grid = (row_tiles,).
# --------------------------------------------------------------------------
def _prenorm_residual_kernel_full(x_ref, w_ref, b_ref, g_ref, beta_ref, o_ref):
    # x_ref: (TM, D); w_ref: (D, D); b/g/beta: (1, D) f32 (cast once on host).
    x = x_ref[...].astype(jnp.float32)

    # LayerNorm over the last axis (biased variance, eps inside rsqrt), f32 stats.
    mean = jnp.mean(x, axis=-1, keepdims=True)
    centered = x - mean
    var = jnp.mean(centered * centered, axis=-1, keepdims=True)
    y = centered * jax.lax.rsqrt(var + LN_EPS) * g_ref[...] + beta_ref[...]

    # fn = Linear(D, D): matmul in the weight's dtype (bf16 path uses the MXU
    # natively), f32 accumulation. Only the activation tile is cast.
    fy = jnp.dot(y.astype(w_ref.dtype), w_ref[...],
                 preferred_element_type=jnp.float32) + b_ref[...]

    # Residual: re-read the input tile instead of keeping the f32 copy of `x`
    # live across the matmul (frees the TM*D*4-byte live range -> less spill).
    o_ref[...] = (fy + x_ref[...].astype(jnp.float32)).astype(o_ref.dtype)


# --------------------------------------------------------------------------
# Kernel 2: N-tiled weight for large D, grid = (row_tiles, n_tiles).
#   x_row_ref : (TM, D)  at (i, 0)  -- LayerNorm input (fetched once per row tile)
#   x_col_ref : (TM, TN) at (i, j)  -- residual columns for this output tile
#   w_ref     : (D, TN)  at (0, j);  b_ref: (1, TN) at (0, j)
#   y_ref     : VMEM scratch (TM, D) holding the normalized activations.
# --------------------------------------------------------------------------
def _prenorm_residual_kernel_ntiled(x_row_ref, x_col_ref, w_ref, b_ref,
                                    g_ref, beta_ref, o_ref, y_ref):
    @pl.when(pl.program_id(1) == 0)
    def _():
        x = x_row_ref[...].astype(jnp.float32)
        mean = jnp.mean(x, axis=-1, keepdims=True)
        centered = x - mean
        var = jnp.mean(centered * centered, axis=-1, keepdims=True)
        y = centered * jax.lax.rsqrt(var + LN_EPS) * g_ref[...] + beta_ref[...]
        y_ref[...] = y.astype(y_ref.dtype)

    fy = jnp.dot(y_ref[...], w_ref[...],
                 preferred_element_type=jnp.float32) + b_ref[...]
    o_ref[...] = (fy + x_col_ref[...].astype(jnp.float32)).astype(o_ref.dtype)


# --------------------------------------------------------------------------
# Wrapper
# --------------------------------------------------------------------------
def prenorm_residual(x, w, b, gamma, beta, *, tile_rows=None, tile_n=None,
                     compute_dtype=None, force_ntiled=False):
    """x: (B, S, D); w: (D, D); b/gamma/beta: (D,).

    compute_dtype: dtype of the matmul operands. None -> auto (bf16 once
      D >= 1024, where the matmul is compute-bound on v6e/v7x; f32 otherwise).
      Accumulation is always f32, LayerNorm stats always f32.
    """
    B, S, D = x.shape
    rows = B * S
    assert D % 128 == 0, "dim must be a multiple of 128 (TPU lane width)"

    if compute_dtype is None and D >= _BF16_MIN_DIM:
        compute_dtype = jnp.bfloat16
    if compute_dtype is not None:
        w = w.astype(compute_dtype)        # cast ONCE on the host

    x2 = x.reshape(rows, D)                # free reshape, no jnp.pad copy
    b2 = b.astype(jnp.float32).reshape(1, D)
    g2 = gamma.astype(jnp.float32).reshape(1, D)
    bt2 = beta.astype(jnp.float32).reshape(1, D)

    x_isz = jnp.dtype(x.dtype).itemsize
    w_isz = jnp.dtype(w.dtype).itemsize

    cost = pl.CostEstimate(
        flops=2 * rows * D * D + 8 * rows * D,
        transcendentals=rows,                               # one rsqrt per row
        bytes_accessed=2 * rows * D * x_isz + D * D * w_isz + 3 * D * 4,
    )

    auto_tile = tile_rows is None
    tr_full = _pick_row_tile(rows, _MAX_ROW_TILE) if auto_tile else tile_rows

    # VMEM needed with the (D, D) weight resident (single-buffered) + tiles.
    full_vmem = (4 * tr_full * D * x_isz        # 2x in-tile + 2x out-tile
                 + D * D * w_isz                # resident weight
                 + 6 * D * 4                    # bias/gamma/beta
                 + 2 * tr_full * D * 4)         # f32 intermediates headroom
    use_ntiled = force_ntiled or full_vmem > _FULL_WEIGHT_VMEM_BUDGET

    # ---------------- resident-weight path (small / medium D) ----------------
    if not use_ntiled:
        tr = tr_full
        grid_rows = _cdiv(rows, tr)            # ragged last tile handled by Pallas
        vmem_limit = min(max(int(full_vmem * 1.5) + (4 << 20), 16 << 20),
                         _VMEM_CAP_BYTES)

        def call(single_buffer_invariants):
            # Grid-invariant operands: constant index_map => double buffering is
            # pure VMEM waste, request a single buffer.
            inv = ({"pipeline_mode": pl.Buffered(1)}
                   if single_buffer_invariants else {})
            return pl.pallas_call(
                _prenorm_residual_kernel_full,
                out_shape=jax.ShapeDtypeStruct((rows, D), x.dtype),
                grid_spec=pltpu.PrefetchScalarGridSpec(
                    num_scalar_prefetch=0,
                    grid=(grid_rows,),
                    in_specs=[
                        pl.BlockSpec((tr, D), lambda i: (i, 0)),        # x rows
                        pl.BlockSpec((D, D), lambda i: (0, 0), **inv),  # weight
                        pl.BlockSpec((1, D), lambda i: (0, 0), **inv),  # bias
                        pl.BlockSpec((1, D), lambda i: (0, 0), **inv),  # gamma
                        pl.BlockSpec((1, D), lambda i: (0, 0), **inv),  # beta
                    ],
                    out_specs=pl.BlockSpec((tr, D), lambda i: (i, 0)),
                ),
                compiler_params=pltpu.CompilerParams(
                    dimension_semantics=("parallel",),
                    vmem_limit_bytes=vmem_limit,
                ),
                cost_estimate=cost,
            )(x2, w, b2, g2, bt2)

        try:
            out2 = call(True)
        except Exception:
            # pipeline_mode=pl.Buffered(1) unsupported by this JAX build ->
            # fall back to default double-buffering of the invariant operands.
            out2 = call(False)
        return out2.reshape(B, S, D)

    # ---------------- N-tiled weight path (large D, e.g. v7x) ----------------
    tr = _pick_row_tile(rows, _NTILED_MAX_ROW_TILE) if auto_tile else tile_rows
    grid_rows = _cdiv(rows, tr)
    if tile_n is None:
        tile_n = min(D, 512)
    assert D % tile_n == 0 and tile_n % 128 == 0
    grid_n = D // tile_n
    y_dtype = w.dtype                           # matmul LHS dtype

    ntiled_vmem = (2 * tr * D * x_isz           # x row tile (double-buffered)
                   + 2 * tr * tile_n * x_isz    # x residual column tile
                   + 2 * D * tile_n * w_isz     # weight slab
                   + 2 * tr * tile_n * x_isz    # out tile
                   + tr * D * jnp.dtype(y_dtype).itemsize   # y scratch
                   + 8 * D * 4)
    vmem_limit = min(max(int(ntiled_vmem * 1.5) + (4 << 20), 16 << 20),
                     _VMEM_CAP_BYTES)

    out2 = pl.pallas_call(
        _prenorm_residual_kernel_ntiled,
        out_shape=jax.ShapeDtypeStruct((rows, D), x.dtype),
        grid_spec=pltpu.PrefetchScalarGridSpec(
            num_scalar_prefetch=0,
            grid=(grid_rows, grid_n),
            in_specs=[
                pl.BlockSpec((tr, D), lambda i, j: (i, 0)),       # x (LayerNorm)
                pl.BlockSpec((tr, tile_n), lambda i, j: (i, j)),  # x (residual)
                pl.BlockSpec((D, tile_n), lambda i, j: (0, j)),   # weight slab
                pl.BlockSpec((1, tile_n), lambda i, j: (0, j)),   # bias slab
                pl.BlockSpec((1, D), lambda i, j: (0, 0)),        # gamma
                pl.BlockSpec((1, D), lambda i, j: (0, 0)),        # beta
            ],
            out_specs=pl.BlockSpec((tr, tile_n), lambda i, j: (i, j)),
            scratch_shapes=[pltpu.VMEM((tr, D), y_dtype)],
        ),
        compiler_params=pltpu.CompilerParams(
            dimension_semantics=("parallel", "arbitrary"),
            vmem_limit_bytes=vmem_limit,
        ),
        cost_estimate=cost,
    )(x2, x2, w, b2, g2, bt2)
    return out2.reshape(B, S, D)


# --------------------------------------------------------------------------
# Pure-JAX reference (mirrors torch LayerNorm + Linear + residual)
# --------------------------------------------------------------------------
def reference(x, w, b, gamma, beta):
    xf = x.astype(jnp.float32)
    mean = jnp.mean(xf, axis=-1, keepdims=True)
    var = jnp.mean((xf - mean) ** 2, axis=-1, keepdims=True)
    xn = (xf - mean) * jax.lax.rsqrt(var + LN_EPS)
    y = xn * gamma.astype(jnp.float32) + beta.astype(jnp.float32)
    return (y @ w.astype(jnp.float32) + b.astype(jnp.float32) + xf).astype(x.dtype)


if __name__ == "__main__":
    key = jax.random.PRNGKey(0)
    kx, kw, kb, kx2, kx3, kw3, kb3 = jax.random.split(key, 7)

    # fn = nn.Linear(dim, dim) params (synthetic); LayerNorm affine at torch init.
    D = 128
    w = jax.random.normal(kw, (D, D), dtype=jnp.float32) * (1.0 / D ** 0.5)
    b = jax.random.normal(kb, (D,), dtype=jnp.float32) * 0.01
    gamma = jnp.ones((D,), dtype=jnp.float32)
    beta = jnp.zeros((D,), dtype=jnp.float32)

    # --- f32 matmul path, 2 row tiles (tight tolerance) ---
    B, S = 2, 8
    x = jax.random.normal(kx, (B, S, D), dtype=jnp.float32)
    out = jax.block_until_ready(prenorm_residual(x, w, b, gamma, beta))
    ref = reference(x, w, b, gamma, beta)
    assert out.shape == (B, S, D)
    assert jnp.allclose(out, ref, atol=1e-4, rtol=1e-4), "f32 path mismatch"

    # --- ragged rows: rows=18, auto tile=16 -> ragged last tile, no host pad ---
    xr = jax.random.normal(kx2, (2, 9, D), dtype=jnp.float32)
    out_r = jax.block_until_ready(prenorm_residual(xr, w, b, gamma, beta))
    ref_r = reference(xr, w, b, gamma, beta)
    assert out_r.shape == (2, 9, D)
    assert jnp.allclose(out_r, ref_r, atol=1e-4, rtol=1e-4), "ragged path mismatch"

    # --- bf16 MXU operand path (deliberate precision trade-off) ---
    out_bf = jax.block_until_ready(
        prenorm_residual(x, w, b, gamma, beta, compute_dtype=jnp.bfloat16))
    assert jnp.allclose(out_bf, ref, atol=5e-2, rtol=5e-2), "bf16 path mismatch"

    # --- N-tiled weight path (forced at small shape to exercise the large-D code) ---
    D2 = 256
    w2 = jax.random.normal(kw3, (D2, D2), dtype=jnp.float32) * (1.0 / D2 ** 0.5)
    b2 = jax.random.normal(kb3, (D2,), dtype=jnp.float32) * 0.01
    g2 = jnp.ones((D2,), dtype=jnp.float32)
    bt2 = jnp.zeros((D2,), dtype=jnp.float32)
    x3 = jax.random.normal(kx3, (2, 16, D2), dtype=jnp.float32)
    out_nt = jax.block_until_ready(
        prenorm_residual(x3, w2, b2, g2, bt2, force_ntiled=True, tile_n=128))
    ref_nt = reference(x3, w2, b2, g2, bt2)
    assert out_nt.shape == (2, 16, D2)
    assert jnp.allclose(out_nt, ref_nt, atol=2e-4, rtol=2e-4), "N-tiled path mismatch"

    print("KERNEL_OK")
</pallas_src>

<mosaic_0001>
module attributes {stable_mosaic.version = 11 : i64} {
  func.func @_prenorm_residual_kernel_full(%arg0: i32, %arg1: memref<8x128xf32, #tpu.memory_space<vmem>>, %arg2: memref<128x128xf32, #tpu.memory_space<vmem>>, %arg3: memref<1x128xf32, #tpu.memory_space<vmem>>, %arg4: memref<1x128xf32, #tpu.memory_space<vmem>>, %arg5: memref<1x128xf32, #tpu.memory_space<vmem>>, %arg6: memref<8x128xf32, #tpu.memory_space<vmem>>) attributes {dimension_semantics = [#tpu.dimension_semantics<parallel>], iteration_bounds = array<i64: 2>, scalar_prefetch = 0 : i64, scratch_operands = 0 : i64, tpu.core_type = #tpu.core_type<tc>, window_params = [{transform_indices = @transform_0, window_bounds = array<i64: 8, 128>}, {pipeline_mode = #tpu.pipeline_mode<synchronous>, transform_indices = @transform_1, window_bounds = array<i64: 128, 128>}, {pipeline_mode = #tpu.pipeline_mode<synchronous>, transform_indices = @transform_2, window_bounds = array<i64: 1, 128>}, {pipeline_mode = #tpu.pipeline_mode<synchronous>, transform_indices = @transform_3, window_bounds = array<i64: 1, 128>}, {pipeline_mode = #tpu.pipeline_mode<synchronous>, transform_indices = @transform_4, window_bounds = array<i64: 1, 128>}, {transform_indices = @transform_5, window_bounds = array<i64: 8, 128>}]} {
    %c0 = arith.constant 0 : index
    %c0_0 = arith.constant 0 : index
    %0 = vector.load %arg1[%c0, %c0_0] : memref<8x128xf32, #tpu.memory_space<vmem>>, vector<8x128xf32>
    %cst = arith.constant dense<0.000000e+00> : vector<8xf32>
    %1 = vector.multi_reduction <add>, %0, %cst [1] : vector<8x128xf32> to vector<8xf32>
    %2 = vector.shape_cast %1 : vector<8xf32> to vector<8x1xf32>
    %cst_1 = arith.constant 1.280000e+02 : f32
    %3 = vector.broadcast %cst_1 : f32 to vector<8x1xf32>
    %4 = arith.divf %2, %3 : vector<8x1xf32>
    %5 = vector.broadcast %4 : vector<8x1xf32> to vector<8x128xf32>
    %6 = arith.subf %0, %5 : vector<8x128xf32>
    %7 = arith.mulf %6, %6 : vector<8x128xf32>
    %cst_2 = arith.constant dense<0.000000e+00> : vector<8xf32>
    %8 = vector.multi_reduction <add>, %7, %cst_2 [1] : vector<8x128xf32> to vector<8xf32>
    %9 = vector.shape_cast %8 : vector<8xf32> to vector<8x1xf32>
    %cst_3 = arith.constant 1.280000e+02 : f32
    %10 = vector.broadcast %cst_3 : f32 to vector<8x1xf32>
    %11 = arith.divf %9, %10 : vector<8x1xf32>
    %cst_4 = arith.constant 9.99999974E-6 : f32
    %12 = vector.broadcast %cst_4 : f32 to vector<8x1xf32>
    %13 = arith.addf %11, %12 : vector<8x1xf32>
    %14 = math.rsqrt %13 : vector<8x1xf32>
    %15 = vector.broadcast %14 : vector<8x1xf32> to vector<8x128xf32>
    %16 = arith.mulf %6, %15 : vector<8x128xf32>
    %c0_5 = arith.constant 0 : index
    %c0_6 = arith.constant 0 : index
    %17 = vector.load %arg4[%c0_5, %c0_6] : memref<1x128xf32, #tpu.memory_space<vmem>>, vector<1x128xf32>
    %18 = vector.broadcast %17 : vector<1x128xf32> to vector<8x128xf32>
    %19 = arith.mulf %16, %18 : vector<8x128xf32>
    %c0_7 = arith.constant 0 : index
    %c0_8 = arith.constant 0 : index
    %20 = vector.load %arg5[%c0_7, %c0_8] : memref<1x128xf32, #tpu.memory_space<vmem>>, vector<1x128xf32>
    %21 = vector.broadcast %20 : vector<1x128xf32> to vector<8x128xf32>
    %22 = arith.addf %19, %21 : vector<8x128xf32>
    %c0_9 = arith.constant 0 : index
    %c0_10 = arith.constant 0 : index
    %23 = vector.load %arg2[%c0_9, %c0_10] : memref<128x128xf32, #tpu.memory_space<vmem>>, vector<128x128xf32>
    %cst_11 = arith.constant dense<0.000000e+00> : vector<8x128xf32>
    %24 = tpu.matmul %22, %23, %cst_11 {dimension_numbers = #tpu.dot_dimension_numbers<[1], [0], [0], [1], [0, 0, 1, 1], [], []>} : vector<8x128xf32>, vector<128x128xf32>, vector<8x128xf32> -> vector<8x128xf32>
    %c0_12 = arith.constant 0 : index
    %c0_13 = arith.constant 0 : index
    %25 = vector.load %arg3[%c0_12, %c0_13] : memref<1x128xf32, #tpu.memory_space<vmem>>, vector<1x128xf32>
    %26 = vector.broadcast %25 : vector<1x128xf32> to vector<8x128xf32>
    %27 = arith.addf %24, %26 : vector<8x128xf32>
    %c0_14 = arith.constant 0 : index
    %c0_15 = arith.constant 0 : index
    %28 = vector.load %arg1[%c0_14, %c0_15] : memref<8x128xf32, #tpu.memory_space<vmem>>, vector<8x128xf32>
    %29 = arith.addf %27, %28 : vector<8x128xf32>
    %c0_16 = arith.constant 0 : index
    %c0_17 = arith.constant 0 : index
    %30 = vector.load %arg6[%c0_16, %c0_17] : memref<8x128xf32, #tpu.memory_space<vmem>>, vector<8x128xf32>
    tpu.vector_store %arg6[%c0_16, %c0_17], %29 {strides = array<i32>} : memref<8x128xf32, #tpu.memory_space<vmem>>, vector<8x128xf32>,
    return
  }
  func.func @transform_0(%arg0: i32) -> (i32, i32) {
    %c0_i32 = arith.constant 0 : i32
    %c0_i32_0 = arith.constant 0 : i32
    return %arg0, %c0_i32 : i32, i32
  }
  func.func @transform_1(%arg0: i32) -> (i32, i32) {
    %c0_i32 = arith.constant 0 : i32
    %c0_i32_0 = arith.constant 0 : i32
    %c0_i32_1 = arith.constant 0 : i32
    return %c0_i32, %c0_i32_0 : i32, i32
  }
  func.func @transform_2(%arg0: i32) -> (i32, i32) {
    %c0_i32 = arith.constant 0 : i32
    %c0_i32_0 = arith.constant 0 : i32
    %c0_i32_1 = arith.constant 0 : i32
    return %c0_i32, %c0_i32_0 : i32, i32
  }
  func.func @transform_3(%arg0: i32) -> (i32, i32) {
    %c0_i32 = arith.constant 0 : i32
    %c0_i32_0 = arith.constant 0 : i32
    %c0_i32_1 = arith.constant 0 : i32
    return %c0_i32, %c0_i32_0 : i32, i32
  }
  func.func @transform_4(%arg0: i32) -> (i32, i32) {
    %c0_i32 = arith.constant 0 : i32
    %c0_i32_0 = arith.constant 0 : i32
    %c0_i32_1 = arith.constant 0 : i32
    return %c0_i32, %c0_i32_0 : i32, i32
  }
  func.func @transform_5(%arg0: i32) -> (i32, i32) {
    %c0_i32 = arith.constant 0 : i32
    %c0_i32_0 = arith.constant 0 : i32
    return %arg0, %c0_i32 : i32, i32
  }
}

module attributes {stable_mosaic.version = 11 : i64} {
  func.func @_prenorm_residual_kernel_full(%arg0: i32, %arg1: memref<8x128xf32, #tpu.memory_space<vmem>>, %arg2: memref<128x128xf32, #tpu.memory_space<vmem>>, %arg3: memref<1x128xf32, #tpu.memory_space<vmem>>, %arg4: memref<1x128xf32, #tpu.memory_space<vmem>>, %arg5: memref<1x128xf32, #tpu.memory_space<vmem>>, %arg6: memref<8x128xf32, #tpu.memory_space<vmem>>) attributes {dimension_semantics = [#tpu.dimension_semantics<parallel>], iteration_bounds = array<i64: 2>, scalar_prefetch = 0 : i64, scratch_operands = 0 : i64, tpu.core_type = #tpu.core_type<tc>, window_params = [{transform_indices = @transform_0, window_bounds = array<i64: 8, 128>}, {pipeline_mode = #tpu.pipeline_mode<synchronous>, transform_indices = @transform_1, window_bounds = array<i64: 128, 128>}, {pipeline_mode = #tpu.pipeline_mode<synchronous>, transform_indices = @transform_2, window_bounds = array<i64: 1, 128>}, {pipeline_mode = #tpu.pipeline_mode<synchronous>, transform_indices = @transform_3, window_bounds = array<i64: 1, 128>}, {pipeline_mode = #tpu.pipeline_mode<synchronous>, transform_indices = @transform_4, window_bounds = array<i64: 1, 128>}, {transform_indices = @transform_5, window_bounds = array<i64: 8, 128>}]} {
    %c0 = arith.constant 0 : index
    %c0_0 = arith.constant 0 : index
    %0 = vector.load %arg1[%c0, %c0_0] : memref<8x128xf32, #tpu.memory_space<vmem>>, vector<8x128xf32>
    %cst = arith.constant dense<0.000000e+00> : vector<8xf32>
    %1 = vector.multi_reduction <add>, %0, %cst [1] : vector<8x128xf32> to vector<8xf32>
    %2 = vector.shape_cast %1 : vector<8xf32> to vector<8x1xf32>
    %cst_1 = arith.constant 1.280000e+02 : f32
    %3 = vector.broadcast %cst_1 : f32 to vector<8x1xf32>
    %4 = arith.divf %2, %3 : vector<8x1xf32>
    %5 = vector.broadcast %4 : vector<8x1xf32> to vector<8x128xf32>
    %6 = arith.subf %0, %5 : vector<8x128xf32>
    %7 = arith.mulf %6, %6 : vector<8x128xf32>
    %cst_2 = arith.constant dense<0.000000e+00> : vector<8xf32>
    %8 = vector.multi_reduction <add>, %7, %cst_2 [1] : vector<8x128xf32> to vector<8xf32>
    %9 = vector.shape_cast %8 : vector<8xf32> to vector<8x1xf32>
    %cst_3 = arith.constant 1.280000e+02 : f32
    %10 = vector.broadcast %cst_3 : f32 to vector<8x1xf32>
    %11 = arith.divf %9, %10 : vector<8x1xf32>
    %cst_4 = arith.constant 9.99999974E-6 : f32
    %12 = vector.broadcast %cst_4 : f32 to vector<8x1xf32>
    %13 = arith.addf %11, %12 : vector<8x1xf32>
    %14 = math.rsqrt %13 : vector<8x1xf32>
    %15 = vector.broadcast %14 : vector<8x1xf32> to vector<8x128xf32>
    %16 = arith.mulf %6, %15 : vector<8x128xf32>
    %c0_5 = arith.constant 0 : index
    %c0_6 = arith.constant 0 : index
    %17 = vector.load %arg4[%c0_5, %c0_6] : memref<1x128xf32, #tpu.memory_space<vmem>>, vector<1x128xf32>
    %18 = vector.broadcast %17 : vector<1x128xf32> to vector<8x128xf32>
    %19 = arith.mulf %16, %18 : vector<8x128xf32>
    %c0_7 = arith.constant 0 : index
    %c0_8 = arith.constant 0 : index
    %20 = vector.load %arg5[%c0_7, %c0_8] : memref<1x128xf32, #tpu.memory_space<vmem>>, vector<1x128xf32>
    %21 = vector.broadcast %20 : vector<1x128xf32> to vector<8x128xf32>
    %22 = arith.addf %19, %21 : vector<8x128xf32>
    %c0_9 = arith.constant 0 : index
    %c0_10 = arith.constant 0 : index
    %23 = vector.load %arg2[%c0_9, %c0_10] : memref<128x128xf32, #tpu.memory_space<vmem>>, vector<128x128xf32>
    %cst_11 = arith.constant dense<0.000000e+00> : vector<8x128xf32>
    %24 = tpu.matmul %22, %23, %cst_11 {dimension_numbers = #tpu.dot_dimension_numbers<[1], [0], [0], [1], [0, 0, 1, 1], [], []>} : vector<8x128xf32>, vector<128x128xf32>, vector<8x128xf32> -> vector<8x128xf32>
    %c0_12 = arith.constant 0 : index
    %c0_13 = arith.constant 0 : index
    %25 = vector.load %arg3[%c0_12, %c0_13] : memref<1x128xf32, #tpu.memory_space<vmem>>, vector<1x128xf32>
    %26 = vector.broadcast %25 : vector<1x128xf32> to vector<8x128xf32>
    %27 = arith.addf %24, %26 : vector<8x128xf32>
    %c0_14 = arith.constant 0 : index
    %c0_15 = arith.constant 0 : index
    %28 = vector.load %arg1[%c0_14, %c0_15] : memref<8x128xf32, #tpu.memory_space<vmem>>, vector<8x128xf32>
    %29 = arith.addf %27, %28 : vector<8x128xf32>
    %c0_16 = arith.constant 0 : index
    %c0_17 = arith.constant 0 : index
    %30 = vector.load %arg6[%c0_16, %c0_17] : memref<8x128xf32, #tpu.memory_space<vmem>>, vector<8x128xf32>
    tpu.vector_store %arg6[%c0_16, %c0_17], %29 {strides = array<i32>} : memref<8x128xf32, #tpu.memory_space<vmem>>, vector<8x128xf32>,
    return
  }
  func.func @transform_0(%arg0: i32) -> (i32, i32) {
    %c0_i32 = arith.constant 0 : i32
    %c0_i32_0 = arith.constant 0 : i32
    return %arg0, %c0_i32 : i32, i32
  }
  func.func @transform_1(%arg0: i32) -> (i32, i32) {
    %c0_i32 = arith.constant 0 : i32
    %c0_i32_0 = arith.constant 0 : i32
    %c0_i32_1 = arith.constant 0 : i32
    return %c0_i32, %c0_i32_0 : i32, i32
  }
  func.func @transform_2(%arg0: i32) -> (i32, i32) {
    %c0_i32 = arith.constant 0 : i32
    %c0_i32_0 = arith.constant 0 : i32
    %c0_i32_1 = arith.constant 0 : i32
    return %c0_i32, %c0_i32_0 : i32, i32
  }
  func.func @transform_3(%arg0: i32) -> (i32, i32) {
    %c0_i32 = arith.constant 0 : i32
    %c0_i32_0 = arith.constant 0 : i32
    %c0_i32_1 = arith.constant 0 : i32
    return %c0_i32, %c0_i32_0 : i32, i32
  }
  func.func @transform_4(%arg0: i32) -> (i32, i32) {
    %c0_i32 = arith.constant 0 : i32
    %c0_i32_0 = arith.constant 0 : i32
    %c0_i32_1 = arith.constant 0 : i32
    return %c0_i32, %c0_i32_0 : i32, i32
  }
  func.func @transform_5(%arg0: i32) -> (i32, i32) {
    %c0_i32 = arith.constant 0 : i32
    %c0_i32_0 = arith.constant 0 : i32
    return %arg0, %c0_i32 : i32, i32
  }
}

</mosaic_0001>

<llo_original>
// kernel: tpu_custom_call.1
$region0: #{tpu_custom_call.1}
  #allocation0 [shape = 'u32[]', space=smem, size = 0x4, offset = 0x4, fixed_abs, tag = 'smem constant byte address 0x4 - core index']
  #allocation1 [shape = 'u32[72,128]{1,0:T(1,128)}', space=vmem, size = 0x9000, scoped, tag = 'internal scratch']
  %s0 = inlined_call_operand.hbm [shape: f32[16,128], index: 0, kind: input, shape index: {}]
  %s1 = inlined_call_operand.hbm [shape: f32[128,128], index: 1, kind: input, shape index: {}]
  %s2 = inlined_call_operand.vmem [shape: f32[1,128], index: 2, kind: input, shape index: {}]
  %s3 = inlined_call_operand.vmem [shape: f32[1,128], index: 3, kind: input, shape index: {}]
  %s4 = inlined_call_operand.vmem [shape: f32[1,128], index: 4, kind: input, shape index: {}]
  %s5 = inlined_call_operand.hbm [shape: f32[16,128], index: 5, kind: output, shape index: {}]
  %s6 = sld [smem:[#allocation0]]
  $region61: #{tpu_custom_call.1} parent=0
    _
  %s8 = ssub.s32 1, %s6
  %s9 = scalar_select 0, %s8, %s6
  $region1: #{tpu_custom_call.1} parent=0
    #allocation2 [shape = 'u8[8192]{0}', space=vmem, size = 0x2000, scoped, tag = 'input window, operand 0']
    #allocation3 [shape = 's32[2]{0}', space=sflag, size = 0x8, scoped, tag = 'scoped memory for tpu_custom_call.1']
    #allocation4 [shape = 's32[2]{0}', space=sflag, size = 0x8, scoped, tag = 'scoped memory for tpu_custom_call.1']
    #allocation5 [shape = 'u8[65536]{0}', space=vmem, size = 0x10000, scoped, tag = 'input window, operand 1, single buffered']
    #allocation6 [shape = 's32[1]{0}', space=sflag, size = 0x4, scoped, tag = 'scoped memory for tpu_custom_call.1']
    #allocation7 [shape = 'u8[8192]{0}', space=vmem, size = 0x2000, scoped, tag = 'output window, operand 0']
    %10 = vsyncpa [#allocation3], 0
    %s11 = scalar_lea.sflag [#allocation3], 1
    %12 = vsyncpa %s11, 0
    %13 = vsyncpa [#allocation6], 0
    %14 = vsyncpa [#allocation4], 0
    %s15 = scalar_lea.sflag [#allocation4], 1
    %16 = vsyncpa %s15, 0
    loop: start=0, step=1, limit=4
    $region2: #{tpu_custom_call.1} parent=1 // loop_pre_header
      _
    $region3: #{tpu_custom_call.1} parent=1 // loop_header
      %s18 = sphi 0, %s22
      %p19 = scmp.ge.s32.totalorder %s18, 4
      %s28 = sphi 0, %s30
      %s31 = sphi 0, %s28
      %s32 = sphi 0, %s31
      %s48 = sphi 0, %s32
      %s52 = sphi 0, %s52
      %s54 = sphi 0, %s52
      %s55 = sphi 0, %s54
      %s69 = sphi 0, %s55
      %s73 = sphi 0, %s73
      %s75 = sphi 0, %s73
      %s76 = sphi 0, %s75
      %s90 = sphi 0, %s76
      %s94 = sphi 0, %s94
      %s96 = sphi 0, %s94
      %s97 = sphi 0, %s96
      %s111 = sphi 0, %s97
      %s115 = sphi 0, %s115
      %s117 = sphi 0, %s115
      %s118 = sphi 0, %s117
      %s132 = sphi 0, %s118
      %s138 = sphi 0, %s140
      %s141 = sphi 0, %s138
      %s142 = sphi 0, %s141
      %s158 = sphi 0, %s142
    $region4: #{tpu_custom_call.1} parent=1 // loop_header_branch
      %21 = sbr.rel (%p19) target = $region8
    $region5: #{tpu_custom_call.1} parent=1 // loop_body
      %s23 = ssub.s32 %s18, 1
      %s24 = ssub.s32 %s18, 2
      %s25 = sadd.s32 %s18, 1
      %s26 = ssub.s32 %s18, %s25
      %p27 = scmp.eq.s32.totalorder %s26, 0
      %s29 = sadd.s32 %s28, 1
      %s30 = scalar_select %p27, %s28, %s29
      %p33 = pneg %p27
      %p34 = scmp.eq.s32.totalorder %s18, 1
      %p35 = por %p33, %p34
      %p36 = scmp.ne.s32.totalorder %s28, %s31
      %p37 = scmp.eq.s32.totalorder %s18, 0
      %p38 = por %p36, %p37
      %p39 = scmp.ne.s32.totalorder %s28, %s31
      %p40 = scmp.eq.s32.totalorder %s23, 1
      %p41 = por %p39, %p40
      %p42 = scmp.ne.s32.totalorder %s31, %s32
      %p43 = scmp.eq.s32.totalorder %s23, 0
      %p44 = por %p42, %p43
      %p45 = scmp.ne.s32.totalorder %s31, %s32
      %p46 = scmp.eq.s32.totalorder %s24, 1
      %p47 = por %p45, %p46
      %p49 = scmp.ne.s32.totalorder %s32, %s48
      %p50 = scmp.eq.s32.totalorder %s24, 0
      %p51 = por %p49, %p50
      %s53 = sadd.s32 %s52, 1
      %p56 = scmp.eq.s32.totalorder %s18, 1
      %p57 = scmp.ne.s32.totalorder %s52, %s54
      %p58 = scmp.eq.s32.totalorder %s18, 0
      %p59 = por %p57, %p58
      %p60 = scmp.ne.s32.totalorder %s52, %s54
      %p61 = scmp.eq.s32.totalorder %s23, 1
      %p62 = por %p60, %p61
      %p63 = scmp.ne.s32.totalorder %s54, %s55
      %p64 = scmp.eq.s32.totalorder %s23, 0
      %p65 = por %p63, %p64
      %p66 = scmp.ne.s32.totalorder %s54, %s55
      %p67 = scmp.eq.s32.totalorder %s24, 1
      %p68 = por %p66, %p67
      %p70 = scmp.ne.s32.totalorder %s55, %s69
      %p71 = scmp.eq.s32.totalorder %s24, 0
      %p72 = por %p70, %p71
      %s74 = sadd.s32 %s73, 1
      %p77 = scmp.eq.s32.totalorder %s18, 1
      %p78 = scmp.ne.s32.totalorder %s73, %s75
      %p79 = scmp.eq.s32.totalorder %s18, 0
      %p80 = por %p78, %p79
      %p81 = scmp.ne.s32.totalorder %s73, %s75
      %p82 = scmp.eq.s32.totalorder %s23, 1
      %p83 = por %p81, %p82
      %p84 = scmp.ne.s32.totalorder %s75, %s76
      %p85 = scmp.eq.s32.totalorder %s23, 0
      %p86 = por %p84, %p85
      %p87 = scmp.ne.s32.totalorder %s75, %s76
      %p88 = scmp.eq.s32.totalorder %s24, 1
      %p89 = por %p87, %p88
      %p91 = scmp.ne.s32.totalorder %s76, %s90
      %p92 = scmp.eq.s32.totalorder %s24, 0
      %p93 = por %p91, %p92
      %s95 = sadd.s32 %s94, 1
      %p98 = scmp.eq.s32.totalorder %s18, 1
      %p99 = scmp.ne.s32.totalorder %s94, %s96
      %p100 = scmp.eq.s32.totalorder %s18, 0
      %p101 = por %p99, %p100
      %p102 = scmp.ne.s32.totalorder %s94, %s96
      %p103 = scmp.eq.s32.totalorder %s23, 1
      %p104 = por %p102, %p103
      %p105 = scmp.ne.s32.totalorder %s96, %s97
      %p106 = scmp.eq.s32.totalorder %s23, 0
      %p107 = por %p105, %p106
      %p108 = scmp.ne.s32.totalorder %s96, %s97
      %p109 = scmp.eq.s32.totalorder %s24, 1
      %p110 = por %p108, %p109
      %p112 = scmp.ne.s32.totalorder %s97, %s111
      %p113 = scmp.eq.s32.totalorder %s24, 0
      %p114 = por %p112, %p113
      %s116 = sadd.s32 %s115, 1
      %p119 = scmp.eq.s32.totalorder %s18, 1
      %p120 = scmp.ne.s32.totalorder %s115, %s117
      %p121 = scmp.eq.s32.totalorder %s18, 0
      %p122 = por %p120, %p121
      %p123 = scmp.ne.s32.totalorder %s115, %s117
      %p124 = scmp.eq.s32.totalorder %s23, 1
      %p125 = por %p123, %p124
      %p126 = scmp.ne.s32.totalorder %s117, %s118
      %p127 = scmp.eq.s32.totalorder %s23, 0
      %p128 = por %p126, %p127
      %p129 = scmp.ne.s32.totalorder %s117, %s118
      %p130 = scmp.eq.s32.totalorder %s24, 1
      %p131 = por %p129, %p130
      %p133 = scmp.ne.s32.totalorder %s118, %s132
      %p134 = scmp.eq.s32.totalorder %s24, 0
      %p135 = por %p133, %p134
      %s136 = ssub.s32 %s18, %s25
      %p137 = scmp.eq.s32.totalorder %s136, 0
      %s139 = sadd.s32 %s138, 1
      %s140 = scalar_select %p137, %s138, %s139
      %p143 = pneg %p137
      %p144 = scmp.eq.s32.totalorder %s18, 1
      %p145 = por %p143, %p144
      %p146 = scmp.ne.s32.totalorder %s138, %s141
      %p147 = scmp.eq.s32.totalorder %s18, 0
      %p148 = por %p146, %p147
      %p149 = scmp.ne.s32.totalorder %s138, %s141
      %p150 = scmp.eq.s32.totalorder %s23, 1
      %p151 = por %p149, %p150
      %p152 = scmp.ne.s32.totalorder %s141, %s142
      %p153 = scmp.eq.s32.totalorder %s23, 0
      %p154 = por %p152, %p153
      %p155 = scmp.ne.s32.totalorder %s141, %s142
      %p156 = scmp.eq.s32.totalorder %s24, 1
      %p157 = por %p155, %p156
      %p159 = scmp.ne.s32.totalorder %s142, %s158
      %p160 = scmp.eq.s32.totalorder %s24, 0
      %p161 = por %p159, %p160
      %p162 = scmp.le.s32.totalorder 1, %s18
      %p163 = scmp.lt.s32.totalorder %s18, 3
      %p164 = pnand %p162, %p163
      %p165 = pneg %p164
      // Predicated region
      $region9: #{tpu_custom_call.1} parent=5 // pred_check
        _
      $region10: #{tpu_custom_call.1} parent=5 // pred_check_branch
        %167 = sbr.rel (%p164) target = $region12
      $region11: #{tpu_custom_call.1} parent=5 // pred_region
        %s168 = ssub.s32 %s18, 1
        // Predicated region
        $region13: #{tpu_custom_call.1} parent=11 // pred_check
          %p169 = pneg %p65
        $region14: #{tpu_custom_call.1} parent=11 // pred_check_branch
          %171 = sbr.rel (%p169) target = $region16
        $region15: #{tpu_custom_call.1} parent=11 // pred_region
          %173 = vsyncadd [#allocation6], 0
          %s174 = sshll.u32 %s1, 4
          %s175 = int_to_ptr.hbm [resolvable:$true] %s174
          %s176 = sshll.u32 [#allocation5], 4
          %s177 = int_to_ptr.vmem [resolvable:$true] %s176
          %182 = dma.hbm_to_vmem [thread:$0]  %s175, 2048, %s177, [#allocation6], 128, 128, 8
        $region16: #{tpu_custom_call.1} parent=11 // pred_fallthru
          _
        // Predicated region
        $region17: #{tpu_custom_call.1} parent=11 // pred_check
          %p183 = pneg %p86
        $region18: #{tpu_custom_call.1} parent=11 // pred_check_branch
          %185 = sbr.rel (%p183) target = $region20
        $region19: #{tpu_custom_call.1} parent=11 // pred_region
          _
        $region20: #{tpu_custom_call.1} parent=11 // pred_fallthru
          _
        // Predicated region
        $region21: #{tpu_custom_call.1} parent=11 // pred_check
          %p186 = pneg %p107
        $region22: #{tpu_custom_call.1} parent=11 // pred_check_branch
          %188 = sbr.rel (%p186) target = $region24
        $region23: #{tpu_custom_call.1} parent=11 // pred_region
          _
        $region24: #{tpu_custom_call.1} parent=11 // pred_fallthru
          _
        // Predicated region
        $region25: #{tpu_custom_call.1} parent=11 // pred_check
          %p189 = pneg %p128
        $region26: #{tpu_custom_call.1} parent=11 // pred_check_branch
          %191 = sbr.rel (%p189) target = $region28
        $region27: #{tpu_custom_call.1} parent=11 // pred_region
          _
        $region28: #{tpu_custom_call.1} parent=11 // pred_fallthru
          _
      $region12: #{tpu_custom_call.1} parent=5 // pred_fallthru
        _
      %p192 = scmp.lt.s32.totalorder %s18, 2
      // Predicated region
      $region29: #{tpu_custom_call.1} parent=5 // pred_check
        %p193 = pneg %p192
      $region30: #{tpu_custom_call.1} parent=5 // pred_check_branch
        %195 = sbr.rel (%p193) target = $region32
      $region31: #{tpu_custom_call.1} parent=5 // pred_region
        // Predicated region
        $region33: #{tpu_custom_call.1} parent=31 // pred_check
          %p196 = pneg %p38
        $region34: #{tpu_custom_call.1} parent=31 // pred_check_branch
          %198 = sbr.rel (%p196) target = $region36
        $region35: #{tpu_custom_call.1} parent=31 // pred_region
          %s199 = sand.u32 %s28, 1
          %s200 = scalar_lea.sflag [#allocation3], %s199
          %s201 = sand.u32 %s28, 1
          %s202 = smul.addr %s201, 8
          %s203 = scalar_lea.vmem [#allocation2], %s202
          %205 = vsyncadd %s200, 0
          %s206 = smul.addr %s18, 8
          %s207 = scalar_lea.hbm %s0, %s206
          %s209 = sshll.u32 %s207, 4
          %s210 = int_to_ptr.hbm [resolvable:$true] %s209
          %s211 = sshll.u32 %s203, 4
          %s212 = int_to_ptr.vmem [resolvable:$true] %s211
          %214 = dma.hbm_to_vmem [thread:$0]  %s210, 128, %s212, %s200
        $region36: #{tpu_custom_call.1} parent=31 // pred_fallthru
          _
      $region32: #{tpu_custom_call.1} parent=5 // pred_fallthru
        _
      %p215 = scmp.le.s32.totalorder 1, %s18
      %p216 = scmp.lt.s32.totalorder %s18, 3
      %p217 = pnand %p215, %p216
      %p218 = pneg %p217
      // Predicated region
      $region37: #{tpu_custom_call.1} parent=5 // pred_check
        _
      $region38: #{tpu_custom_call.1} parent=5 // pred_check_branch
        %220 = sbr.rel (%p217) target = $region40
      $region39: #{tpu_custom_call.1} parent=5 // pred_region
        %s221 = ssub.s32 %s18, 1
        %s222 = sand.u32 %s31, 1
        %s223 = scalar_lea.sflag [#allocation3], %s222
        %s224 = sand.u32 %s31, 1
        %s225 = smul.addr %s224, 8
        %s226 = scalar_lea.vmem [#allocation2], %s225
        // Predicated region
        $region41: #{tpu_custom_call.1} parent=39 // pred_check
          %p227 = pneg %p44
        $region42: #{tpu_custom_call.1} parent=39 // pred_check_branch
          %229 = sbr.rel (%p227) target = $region44
        $region43: #{tpu_custom_call.1} parent=39 // pred_region
          %231 = dma.done %s223, 128
        $region44: #{tpu_custom_call.1} parent=39 // pred_fallthru
          _
        // Predicated region
        $region45: #{tpu_custom_call.1} parent=39 // pred_check
          %p232 = pneg %p65
        $region46: #{tpu_custom_call.1} parent=39 // pred_check_branch
          %234 = sbr.rel (%p232) target = $region48
        $region47: #{tpu_custom_call.1} parent=39 // pred_region
          %236 = dma.done [#allocation6], 2048
        $region48: #{tpu_custom_call.1} parent=39 // pred_fallthru
          _
        %s237 = sand.u32 %s31, 1
        %s238 = scalar_lea.sflag [#allocation3], %s237
        %s239 = sand.u32 %s31, 1
        %s240 = smul.addr %s239, 8
        %s241 = scalar_lea.vmem [#allocation2], %s240
        %p242 = pneg %p44
        %p243 = pneg %p41
        %p244 = pneg %p65
        %p245 = pneg %p62
        %p246 = pneg %p86
        %p247 = pneg %p83
        %p248 = pneg %p107
        %p249 = pneg %p104
        %p250 = pneg %p128
        %p251 = pneg %p125
        %p252 = pneg %p154
        %p253 = pneg %p151
        %s254 = sand.u32 %s141, 1
        %s255 = scalar_lea.sflag [#allocation4], %s254
        %s256 = sand.u32 %s141, 1
        %s257 = smul.addr %s256, 8
        %s258 = scalar_lea.vmem [#allocation7], %s257
        %v259 = vld [vmem:[%s226] sm:$0xff]
        %260 = vadd.xlane.f32.xlu0 %v259
        %v261 = vpop.xlane.xlu0 %260
        %v262 = vrcp.pop 128.0
        %v263 = vmul.f32 128.0, %v262
        %v264 = vsub.f32 1.0, %v263
        %v265 = vmul.f32 %v262, %v264
        %v266 = vadd.f32 %v262, %v265
        %vm267 = vweird.f32 %v262
        %v268 = vsel %vm267, %v262, %v266
        %v269 = vmul.f32 %v261, %v268
        %v270 = vsub.f32 %v259, %v269
        %v271 = vmul.f32 %v270, %v270
        %272 = vadd.xlane.f32.xlu0 %v271
        %v273 = vpop.xlane.xlu0 %272
        %v274 = vmul.f32 %v273, %v268
        %v275 = vadd.f32 %v274, 1e-05
        %v276 = vrsqrt.pop %v275
        %v277 = vmul.f32 %v276, %v275
        %v278 = vmul.f32 %v277, %v276
        %v279 = vmul.f32 0.5, %v278
        %v280 = vsub.f32 1.5, %v279
        %v281 = vmul.f32 %v276, %v280
        %vm282 = vweird.f32 %v275
        %vm283 = vweird.f32 %v276
        %vm284 = vmor %vm282, %vm283
        %v285 = vsel %vm284, %v276, %v281
        %v286 = vmul.f32 %v270, %v285
        %v287 = vld [vmem:[%s3] sm:$0x1]
        %v289 = vperm.slane %v287, 0
        %v291 = vmul.f32 %v286, %v289
        %v292 = vld [vmem:[%s4] sm:$0x1]
        %v294 = vperm.slane %v292, 0
        %v296 = vadd.f32 %v291, %v294
        %v297 = vld [vmem:[#allocation5] sm:$0xff]
        %v298 = vld [vmem:[#allocation5 + $0x8] sm:$0xff]
        %v299 = vld [vmem:[#allocation5 + $0x10] sm:$0xff]
        %v300 = vld [vmem:[#allocation5 + $0x18] sm:$0xff]
        %v301 = vld [vmem:[#allocation5 + $0x20] sm:$0xff]
        %v302 = vld [vmem:[#allocation5 + $0x28] sm:$0xff]
        %v303 = vld [vmem:[#allocation5 + $0x30] sm:$0xff]
        %v304 = vld [vmem:[#allocation5 + $0x38] sm:$0xff]
        %v305 = vld [vmem:[#allocation5 + $0x40] sm:$0xff]
        %v306 = vld [vmem:[#allocation5 + $0x48] sm:$0xff]
        %v307 = vld [vmem:[#allocation5 + $0x50] sm:$0xff]
        %v308 = vld [vmem:[#allocation5 + $0x58] sm:$0xff]
        %v309 = vld [vmem:[#allocation5 + $0x60] sm:$0xff]
        %v310 = vld [vmem:[#allocation5 + $0x68] sm:$0xff]
        %v311 = vld [vmem:[#allocation5 + $0x70] sm:$0xff]
        %v312 = vld [vmem:[#allocation5 + $0x78] sm:$0xff]
        %v313 = vld [vmem:[%s2] sm:$0x1]
        %v315 = vperm.slane %v313, 0
        %317 = vmatpush.msra.mxu0 %v312
        %318 = vmatpush.msra.mxu0 %v311
        %319 = vmatpush.msra.mxu0 %v310
        %320 = vmatpush.msra.mxu0 %v309
        %321 = vmatpush.msra.mxu0 %v308
        %322 = vmatpush.msra.mxu0 %v307
        %323 = vmatpush.msra.mxu0 %v306
        %324 = vmatpush.msra.mxu0 %v305
        %325 = vmatpush.msra.mxu0 %v304
        %326 = vmatpush.msra.mxu0 %v303
        %327 = vmatpush.msra.mxu0 %v302
        %328 = vmatpush.msra.mxu0 %v301
        %329 = vmatpush.msra.mxu0 %v300
        %330 = vmatpush.msra.mxu0 %v299
        %331 = vmatpush.msra.mxu0 %v298
        %332 = vmatpush.msra.mxu0 %v297
        %333 = vmatmul.f32.gmra.mxu0 %v296
        %v334 = vpop.f32.mrf.mxu0
        %v335 = vadd.f32 %v315, %v334
        %336 = vdwg.mxu0
        %v337 = vadd.f32 %v335, %v259
        %338 = vst [vmem:[%s258] sm:$0xff] %v337
        %s339 = sand.u32 %s141, 1
        %s340 = scalar_lea.sflag [#allocation4], %s339
        %s341 = sand.u32 %s141, 1
        %s342 = smul.addr %s341, 8
        %s343 = scalar_lea.vmem [#allocation7], %s342
        // Predicated region
        $region49: #{tpu_custom_call.1} parent=39 // pred_check
          %p344 = pneg %p151
        $region50: #{tpu_custom_call.1} parent=39 // pred_check_branch
          %346 = sbr.rel (%p344) target = $region52
        $region51: #{tpu_custom_call.1} parent=39 // pred_region
          %348 = vsyncadd %s340, 0
          %s349 = smul.addr %s23, 8
          %s350 = scalar_lea.hbm %s5, %s349
          %s352 = sshll.u32 %s343, 4
          %s353 = int_to_ptr.vmem [resolvable:$true] %s352
          %s354 = sshll.u32 %s350, 4
          %s355 = int_to_ptr.hbm [resolvable:$true] %s354
          %357 = dma.vmem_to_hbm [thread:$0]  %s353, 128, %s355, %s340
        $region52: #{tpu_custom_call.1} parent=39 // pred_fallthru
          _
      $region40: #{tpu_custom_call.1} parent=5 // pred_fallthru
        _
      %p358 = scmp.le.s32.totalorder 2, %s18
      // Predicated region
      $region53: #{tpu_custom_call.1} parent=5 // pred_check
        %p359 = pneg %p358
      $region54: #{tpu_custom_call.1} parent=5 // pred_check_branch
        %361 = sbr.rel (%p359) target = $region56
      $region55: #{tpu_custom_call.1} parent=5 // pred_region
        %s362 = ssub.s32 %s18, 2
        // Predicated region
        $region57: #{tpu_custom_call.1} parent=55 // pred_check
          %p363 = pneg %p157
        $region58: #{tpu_custom_call.1} parent=55 // pred_check_branch
          %365 = sbr.rel (%p363) target = $region60
        $region59: #{tpu_custom_call.1} parent=55 // pred_region
          %s366 = sand.u32 %s142, 1
          %s367 = scalar_lea.sflag [#allocation4], %s366
          %s368 = sand.u32 %s142, 1
          %s369 = smul.addr %s368, 8
          %s370 = scalar_lea.vmem [#allocation7], %s369
          %372 = dma.done %s367, 128
        $region60: #{tpu_custom_call.1} parent=55 // pred_fallthru
          _
      $region56: #{tpu_custom_call.1} parent=5 // pred_fallthru
        _
    $region6: #{tpu_custom_call.1} parent=1 // loop_footer
      %s22 = sadd.s32 1, %s18
    $region7: #{tpu_custom_call.1} parent=1 // loop_footer_branch
      %17 = sbr.rel target = $region3
    $region8: #{tpu_custom_call.1} parent=1 // loop_exit
      _
    %373 = vsyncpa [#allocation3], 1
    %s374 = scalar_lea.sflag [#allocation3], 1
    %375 = vsyncpa %s374, 1
    %376 = vsyncpa [#allocation6], 1
    %377 = vsyncpa [#allocation4], 1
    %s378 = scalar_lea.sflag [#allocation4], 1
    %379 = vsyncpa %s378, 1

// kernel: tpu_custom_call.1
$region0: #{tpu_custom_call.1}
  #allocation0 [shape = 'u32[]', space=smem, size = 0x4, offset = 0x4, fixed_abs, tag = 'smem constant byte address 0x4 - core index']
  #allocation1 [shape = 'u32[72,128]{1,0:T(1,128)}', space=vmem, size = 0x9000, scoped, tag = 'internal scratch']
  %s0 = inlined_call_operand.hbm [shape: f32[16,128], index: 0, kind: input, shape index: {}]
  %s1 = inlined_call_operand.hbm [shape: f32[128,128], index: 1, kind: input, shape index: {}]
  %s2 = inlined_call_operand.vmem [shape: f32[1,128], index: 2, kind: input, shape index: {}]
  %s3 = inlined_call_operand.vmem [shape: f32[1,128], index: 3, kind: input, shape index: {}]
  %s4 = inlined_call_operand.vmem [shape: f32[1,128], index: 4, kind: input, shape index: {}]
  %s5 = inlined_call_operand.hbm [shape: f32[16,128], index: 5, kind: output, shape index: {}]
  %s6 = sld [smem:[#allocation0]]
  $region61: #{tpu_custom_call.1} parent=0
    _
  %s8 = ssub.s32 1, %s6
  %s9 = scalar_select 0, %s8, %s6
  $region1: #{tpu_custom_call.1} parent=0
    #allocation2 [shape = 'u8[8192]{0}', space=vmem, size = 0x2000, scoped, tag = 'input window, operand 0']
    #allocation3 [shape = 's32[2]{0}', space=sflag, size = 0x8, scoped, tag = 'scoped memory for tpu_custom_call.1']
    #allocation4 [shape = 's32[2]{0}', space=sflag, size = 0x8, scoped, tag = 'scoped memory for tpu_custom_call.1']
    #allocation5 [shape = 'u8[65536]{0}', space=vmem, size = 0x10000, scoped, tag = 'input window, operand 1, single buffered']
    #allocation6 [shape = 's32[1]{0}', space=sflag, size = 0x4, scoped, tag = 'scoped memory for tpu_custom_call.1']
    #allocation7 [shape = 'u8[8192]{0}', space=vmem, size = 0x2000, scoped, tag = 'output window, operand 0']
    %10 = vsyncpa [#allocation3], 0
    %s11 = scalar_lea.sflag [#allocation3], 1
    %12 = vsyncpa %s11, 0
    %13 = vsyncpa [#allocation6], 0
    %14 = vsyncpa [#allocation4], 0
    %s15 = scalar_lea.sflag [#allocation4], 1
    %16 = vsyncpa %s15, 0
    loop: start=0, step=1, limit=4
    $region2: #{tpu_custom_call.1} parent=1 // loop_pre_header
      _
    $region3: #{tpu_custom_call.1} parent=1 // loop_header
      %s18 = sphi 0, %s22
      %p19 = scmp.ge.s32.totalorder %s18, 4
      %s28 = sphi 0, %s30
      %s31 = sphi 0, %s28
      %s32 = sphi 0, %s31
      %s48 = sphi 0, %s32
      %s52 = sphi 0, %s52
      %s54 = sphi 0, %s52
      %s55 = sphi 0, %s54
      %s69 = sphi 0, %s55
      %s73 = sphi 0, %s73
      %s75 = sphi 0, %s73
      %s76 = sphi 0, %s75
      %s90 = sphi 0, %s76
      %s94 = sphi 0, %s94
      %s96 = sphi 0, %s94
      %s97 = sphi 0, %s96
      %s111 = sphi 0, %s97
      %s115 = sphi 0, %s115
      %s117 = sphi 0, %s115
      %s118 = sphi 0, %s117
      %s132 = sphi 0, %s118
      %s138 = sphi 0, %s140
      %s141 = sphi 0, %s138
      %s142 = sphi 0, %s141
      %s158 = sphi 0, %s142
    $region4: #{tpu_custom_call.1} parent=1 // loop_header_branch
      %21 = sbr.rel (%p19) target = $region8
    $region5: #{tpu_custom_call.1} parent=1 // loop_body
      %s23 = ssub.s32 %s18, 1
      %s24 = ssub.s32 %s18, 2
      %s25 = sadd.s32 %s18, 1
      %s26 = ssub.s32 %s18, %s25
      %p27 = scmp.eq.s32.totalorder %s26, 0
      %s29 = sadd.s32 %s28, 1
      %s30 = scalar_select %p27, %s28, %s29
      %p33 = pneg %p27
      %p34 = scmp.eq.s32.totalorder %s18, 1
      %p35 = por %p33, %p34
      %p36 = scmp.ne.s32.totalorder %s28, %s31
      %p37 = scmp.eq.s32.totalorder %s18, 0
      %p38 = por %p36, %p37
      %p39 = scmp.ne.s32.totalorder %s28, %s31
      %p40 = scmp.eq.s32.totalorder %s23, 1
      %p41 = por %p39, %p40
      %p42 = scmp.ne.s32.totalorder %s31, %s32
      %p43 = scmp.eq.s32.totalorder %s23, 0
      %p44 = por %p42, %p43
      %p45 = scmp.ne.s32.totalorder %s31, %s32
      %p46 = scmp.eq.s32.totalorder %s24, 1
      %p47 = por %p45, %p46
      %p49 = scmp.ne.s32.totalorder %s32, %s48
      %p50 = scmp.eq.s32.totalorder %s24, 0
      %p51 = por %p49, %p50
      %s53 = sadd.s32 %s52, 1
      %p56 = scmp.eq.s32.totalorder %s18, 1
      %p57 = scmp.ne.s32.totalorder %s52, %s54
      %p58 = scmp.eq.s32.totalorder %s18, 0
      %p59 = por %p57, %p58
      %p60 = scmp.ne.s32.totalorder %s52, %s54
      %p61 = scmp.eq.s32.totalorder %s23, 1
      %p62 = por %p60, %p61
      %p63 = scmp.ne.s32.totalorder %s54, %s55
      %p64 = scmp.eq.s32.totalorder %s23, 0
      %p65 = por %p63, %p64
      %p66 = scmp.ne.s32.totalorder %s54, %s55
      %p67 = scmp.eq.s32.totalorder %s24, 1
      %p68 = por %p66, %p67
      %p70 = scmp.ne.s32.totalorder %s55, %s69
      %p71 = scmp.eq.s32.totalorder %s24, 0
      %p72 = por %p70, %p71
      %s74 = sadd.s32 %s73, 1
      %p77 = scmp.eq.s32.totalorder %s18, 1
      %p78 = scmp.ne.s32.totalorder %s73, %s75
      %p79 = scmp.eq.s32.totalorder %s18, 0
      %p80 = por %p78, %p79
      %p81 = scmp.ne.s32.totalorder %s73, %s75
      %p82 = scmp.eq.s32.totalorder %s23, 1
      %p83 = por %p81, %p82
      %p84 = scmp.ne.s32.totalorder %s75, %s76
      %p85 = scmp.eq.s32.totalorder %s23, 0
      %p86 = por %p84, %p85
      %p87 = scmp.ne.s32.totalorder %s75, %s76
      %p88 = scmp.eq.s32.totalorder %s24, 1
      %p89 = por %p87, %p88
      %p91 = scmp.ne.s32.totalorder %s76, %s90
      %p92 = scmp.eq.s32.totalorder %s24, 0
      %p93 = por %p91, %p92
      %s95 = sadd.s32 %s94, 1
      %p98 = scmp.eq.s32.totalorder %s18, 1
      %p99 = scmp.ne.s32.totalorder %s94, %s96
      %p100 = scmp.eq.s32.totalorder %s18, 0
      %p101 = por %p99, %p100
      %p102 = scmp.ne.s32.totalorder %s94, %s96
      %p103 = scmp.eq.s32.totalorder %s23, 1
      %p104 = por %p102, %p103
      %p105 = scmp.ne.s32.totalorder %s96, %s97
      %p106 = scmp.eq.s32.totalorder %s23, 0
      %p107 = por %p105, %p106
      %p108 = scmp.ne.s32.totalorder %s96, %s97
      %p109 = scmp.eq.s32.totalorder %s24, 1
      %p110 = por %p108, %p109
      %p112 = scmp.ne.s32.totalorder %s97, %s111
      %p113 = scmp.eq.s32.totalorder %s24, 0
      %p114 = por %p112, %p113
      %s116 = sadd.s32 %s115, 1
      %p119 = scmp.eq.s32.totalorder %s18, 1
      %p120 = scmp.ne.s32.totalorder %s115, %s117
      %p121 = scmp.eq.s32.totalorder %s18, 0
      %p122 = por %p120, %p121
      %p123 = scmp.ne.s32.totalorder %s115, %s117
      %p124 = scmp.eq.s32.totalorder %s23, 1
      %p125 = por %p123, %p124
      %p126 = scmp.ne.s32.totalorder %s117, %s118
      %p127 = scmp.eq.s32.totalorder %s23, 0
      %p128 = por %p126, %p127
      %p129 = scmp.ne.s32.totalorder %s117, %s118
      %p130 = scmp.eq.s32.totalorder %s24, 1
      %p131 = por %p129, %p130
      %p133 = scmp.ne.s32.totalorder %s118, %s132
      %p134 = scmp.eq.s32.totalorder %s24, 0
      %p135 = por %p133, %p134
      %s136 = ssub.s32 %s18, %s25
      %p137 = scmp.eq.s32.totalorder %s136, 0
      %s139 = sadd.s32 %s138, 1
      %s140 = scalar_select %p137, %s138, %s139
      %p143 = pneg %p137
      %p144 = scmp.eq.s32.totalorder %s18, 1
      %p145 = por %p143, %p144
      %p146 = scmp.ne.s32.totalorder %s138, %s141
      %p147 = scmp.eq.s32.totalorder %s18, 0
      %p148 = por %p146, %p147
      %p149 = scmp.ne.s32.totalorder %s138, %s141
      %p150 = scmp.eq.s32.totalorder %s23, 1
      %p151 = por %p149, %p150
      %p152 = scmp.ne.s32.totalorder %s141, %s142
      %p153 = scmp.eq.s32.totalorder %s23, 0
      %p154 = por %p152, %p153
      %p155 = scmp.ne.s32.totalorder %s141, %s142
      %p156 = scmp.eq.s32.totalorder %s24, 1
      %p157 = por %p155, %p156
      %p159 = scmp.ne.s32.totalorder %s142, %s158
      %p160 = scmp.eq.s32.totalorder %s24, 0
      %p161 = por %p159, %p160
      %p162 = scmp.le.s32.totalorder 1, %s18
      %p163 = scmp.lt.s32.totalorder %s18, 3
      %p164 = pnand %p162, %p163
      %p165 = pneg %p164
      // Predicated region
      $region9: #{tpu_custom_call.1} parent=5 // pred_check
        _
      $region10: #{tpu_custom_call.1} parent=5 // pred_check_branch
        %167 = sbr.rel (%p164) target = $region12
      $region11: #{tpu_custom_call.1} parent=5 // pred_region
        %s168 = ssub.s32 %s18, 1
        // Predicated region
        $region13: #{tpu_custom_call.1} parent=11 // pred_check
          %p169 = pneg %p65
        $region14: #{tpu_custom_call.1} parent=11 // pred_check_branch
          %171 = sbr.rel (%p169) target = $region16
        $region15: #{tpu_custom_call.1} parent=11 // pred_region
          %173 = vsyncadd [#allocation6], 0
          %s174 = sshll.u32 %s1, 4
          %s175 = int_to_ptr.hbm [resolvable:$true] %s174
          %s176 = sshll.u32 [#allocation5], 4
          %s177 = int_to_ptr.vmem [resolvable:$true] %s176
          %182 = dma.hbm_to_vmem [thread:$0]  %s175, 2048, %s177, [#allocation6], 128, 128, 8
        $region16: #{tpu_custom_call.1} parent=11 // pred_fallthru
          _
        // Predicated region
        $region17: #{tpu_custom_call.1} parent=11 // pred_check
          %p183 = pneg %p86
        $region18: #{tpu_custom_call.1} parent=11 // pred_check_branch
          %185 = sbr.rel (%p183) target = $region20
        $region19: #{tpu_custom_call.1} parent=11 // pred_region
          _
        $region20: #{tpu_custom_call.1} parent=11 // pred_fallthru
          _
        // Predicated region
        $region21: #{tpu_custom_call.1} parent=11 // pred_check
          %p186 = pneg %p107
        $region22: #{tpu_custom_call.1} parent=11 // pred_check_branch
          %188 = sbr.rel (%p186) target = $region24
        $region23: #{tpu_custom_call.1} parent=11 // pred_region
          _
        $region24: #{tpu_custom_call.1} parent=11 // pred_fallthru
          _
        // Predicated region
        $region25: #{tpu_custom_call.1} parent=11 // pred_check
          %p189 = pneg %p128
        $region26: #{tpu_custom_call.1} parent=11 // pred_check_branch
          %191 = sbr.rel (%p189) target = $region28
        $region27: #{tpu_custom_call.1} parent=11 // pred_region
          _
        $region28: #{tpu_custom_call.1} parent=11 // pred_fallthru
          _
      $region12: #{tpu_custom_call.1} parent=5 // pred_fallthru
        _
      %p192 = scmp.lt.s32.totalorder %s18, 2
      // Predicated region
      $region29: #{tpu_custom_call.1} parent=5 // pred_check
        %p193 = pneg %p192
      $region30: #{tpu_custom_call.1} parent=5 // pred_check_branch
        %195 = sbr.rel (%p193) target = $region32
      $region31: #{tpu_custom_call.1} parent=5 // pred_region
        // Predicated region
        $region33: #{tpu_custom_call.1} parent=31 // pred_check
          %p196 = pneg %p38
        $region34: #{tpu_custom_call.1} parent=31 // pred_check_branch
          %198 = sbr.rel (%p196) target = $region36
        $region35: #{tpu_custom_call.1} parent=31 // pred_region
          %s199 = sand.u32 %s28, 1
          %s200 = scalar_lea.sflag [#allocation3], %s199
          %s201 = sand.u32 %s28, 1
          %s202 = smul.addr %s201, 8
          %s203 = scalar_lea.vmem [#allocation2], %s202
          %205 = vsyncadd %s200, 0
          %s206 = smul.addr %s18, 8
          %s207 = scalar_lea.hbm %s0, %s206
          %s209 = sshll.u32 %s207, 4
          %s210 = int_to_ptr.hbm [resolvable:$true] %s209
          %s211 = sshll.u32 %s203, 4
          %s212 = int_to_ptr.vmem [resolvable:$true] %s211
          %214 = dma.hbm_to_vmem [thread:$0]  %s210, 128, %s212, %s200
        $region36: #{tpu_custom_call.1} parent=31 // pred_fallthru
          _
      $region32: #{tpu_custom_call.1} parent=5 // pred_fallthru
        _
      %p215 = scmp.le.s32.totalorder 1, %s18
      %p216 = scmp.lt.s32.totalorder %s18, 3
      %p217 = pnand %p215, %p216
      %p218 = pneg %p217
      // Predicated region
      $region37: #{tpu_custom_call.1} parent=5 // pred_check
        _
      $region38: #{tpu_custom_call.1} parent=5 // pred_check_branch
        %220 = sbr.rel (%p217) target = $region40
      $region39: #{tpu_custom_call.1} parent=5 // pred_region
        %s221 = ssub.s32 %s18, 1
        %s222 = sand.u32 %s31, 1
        %s223 = scalar_lea.sflag [#allocation3], %s222
        %s224 = sand.u32 %s31, 1
        %s225 = smul.addr %s224, 8
        %s226 = scalar_lea.vmem [#allocation2], %s225
        // Predicated region
        $region41: #{tpu_custom_call.1} parent=39 // pred_check
          %p227 = pneg %p44
        $region42: #{tpu_custom_call.1} parent=39 // pred_check_branch
          %229 = sbr.rel (%p227) target = $region44
        $region43: #{tpu_custom_call.1} parent=39 // pred_region
          %231 = dma.done %s223, 128
        $region44: #{tpu_custom_call.1} parent=39 // pred_fallthru
          _
        // Predicated region
        $region45: #{tpu_custom_call.1} parent=39 // pred_check
          %p232 = pneg %p65
        $region46: #{tpu_custom_call.1} parent=39 // pred_check_branch
          %234 = sbr.rel (%p232) target = $region48
        $region47: #{tpu_custom_call.1} parent=39 // pred_region
          %236 = dma.done [#allocation6], 2048
        $region48: #{tpu_custom_call.1} parent=39 // pred_fallthru
          _
        %s237 = sand.u32 %s31, 1
        %s238 = scalar_lea.sflag [#allocation3], %s237
        %s239 = sand.u32 %s31, 1
        %s240 = smul.addr %s239, 8
        %s241 = scalar_lea.vmem [#allocation2], %s240
        %p242 = pneg %p44
        %p243 = pneg %p41
        %p244 = pneg %p65
        %p245 = pneg %p62
        %p246 = pneg %p86
        %p247 = pneg %p83
        %p248 = pneg %p107
        %p249 = pneg %p104
        %p250 = pneg %p128
        %p251 = pneg %p125
        %p252 = pneg %p154
        %p253 = pneg %p151
        %s254 = sand.u32 %s141, 1
        %s255 = scalar_lea.sflag [#allocation4], %s254
        %s256 = sand.u32 %s141, 1
        %s257 = smul.addr %s256, 8
        %s258 = scalar_lea.vmem [#allocation7], %s257
        %v259 = vld [vmem:[%s226] sm:$0xff]
        %260 = vadd.xlane.f32.xlu0 %v259
        %v261 = vpop.xlane.xlu0 %260
        %v262 = vrcp.pop 128.0
        %v263 = vmul.f32 128.0, %v262
        %v264 = vsub.f32 1.0, %v263
        %v265 = vmul.f32 %v262, %v264
        %v266 = vadd.f32 %v262, %v265
        %vm267 = vweird.f32 %v262
        %v268 = vsel %vm267, %v262, %v266
        %v269 = vmul.f32 %v261, %v268
        %v270 = vsub.f32 %v259, %v269
        %v271 = vmul.f32 %v270, %v270
        %272 = vadd.xlane.f32.xlu0 %v271
        %v273 = vpop.xlane.xlu0 %272
        %v274 = vmul.f32 %v273, %v268
        %v275 = vadd.f32 %v274, 1e-05
        %v276 = vrsqrt.pop %v275
        %v277 = vmul.f32 %v276, %v275
        %v278 = vmul.f32 %v277, %v276
        %v279 = vmul.f32 0.5, %v278
        %v280 = vsub.f32 1.5, %v279
        %v281 = vmul.f32 %v276, %v280
        %vm282 = vweird.f32 %v275
        %vm283 = vweird.f32 %v276
        %vm284 = vmor %vm282, %vm283
        %v285 = vsel %vm284, %v276, %v281
        %v286 = vmul.f32 %v270, %v285
        %v287 = vld [vmem:[%s3] sm:$0x1]
        %v289 = vperm.slane %v287, 0
        %v291 = vmul.f32 %v286, %v289
        %v292 = vld [vmem:[%s4] sm:$0x1]
        %v294 = vperm.slane %v292, 0
        %v296 = vadd.f32 %v291, %v294
        %v297 = vld [vmem:[#allocation5] sm:$0xff]
        %v298 = vld [vmem:[#allocation5 + $0x8] sm:$0xff]
        %v299 = vld [vmem:[#allocation5 + $0x10] sm:$0xff]
        %v300 = vld [vmem:[#allocation5 + $0x18] sm:$0xff]
        %v301 = vld [vmem:[#allocation5 + $0x20] sm:$0xff]
        %v302 = vld [vmem:[#allocation5 + $0x28] sm:$0xff]
        %v303 = vld [vmem:[#allocation5 + $0x30] sm:$0xff]
        %v304 = vld [vmem:[#allocation5 + $0x38] sm:$0xff]
        %v305 = vld [vmem:[#allocation5 + $0x40] sm:$0xff]
        %v306 = vld [vmem:[#allocation5 + $0x48] sm:$0xff]
        %v307 = vld [vmem:[#allocation5 + $0x50] sm:$0xff]
        %v308 = vld [vmem:[#allocation5 + $0x58] sm:$0xff]
        %v309 = vld [vmem:[#allocation5 + $0x60] sm:$0xff]
        %v310 = vld [vmem:[#allocation5 + $0x68] sm:$0xff]
        %v311 = vld [vmem:[#allocation5 + $0x70] sm:$0xff]
        %v312 = vld [vmem:[#allocation5 + $0x78] sm:$0xff]
        %v313 = vld [vmem:[%s2] sm:$0x1]
        %v315 = vperm.slane %v313, 0
        %317 = vmatpush.msra.mxu0 %v312
        %318 = vmatpush.msra.mxu0 %v311
        %319 = vmatpush.msra.mxu0 %v310
        %320 = vmatpush.msra.mxu0 %v309
        %321 = vmatpush.msra.mxu0 %v308
        %322 = vmatpush.msra.mxu0 %v307
        %323 = vmatpush.msra.mxu0 %v306
        %324 = vmatpush.msra.mxu0 %v305
        %325 = vmatpush.msra.mxu0 %v304
        %326 = vmatpush.msra.mxu0 %v303
        %327 = vmatpush.msra.mxu0 %v302
        %328 = vmatpush.msra.mxu0 %v301
        %329 = vmatpush.msra.mxu0 %v300
        %330 = vmatpush.msra.mxu0 %v299
        %331 = vmatpush.msra.mxu0 %v298
        %332 = vmatpush.msra.mxu0 %v297
        %333 = vmatmul.f32.gmra.mxu0 %v296
        %v334 = vpop.f32.mrf.mxu0
        %v335 = vadd.f32 %v315, %v334
        %336 = vdwg.mxu0
        %v337 = vadd.f32 %v335, %v259
        %338 = vst [vmem:[%s258] sm:$0xff] %v337
        %s339 = sand.u32 %s141, 1
        %s340 = scalar_lea.sflag [#allocation4], %s339
        %s341 = sand.u32 %s141, 1
        %s342 = smul.addr %s341, 8
        %s343 = scalar_lea.vmem [#allocation7], %s342
        // Predicated region
        $region49: #{tpu_custom_call.1} parent=39 // pred_check
          %p344 = pneg %p151
        $region50: #{tpu_custom_call.1} parent=39 // pred_check_branch
          %346 = sbr.rel (%p344) target = $region52
        $region51: #{tpu_custom_call.1} parent=39 // pred_region
          %348 = vsyncadd %s340, 0
          %s349 = smul.addr %s23, 8
          %s350 = scalar_lea.hbm %s5, %s349
          %s352 = sshll.u32 %s343, 4
          %s353 = int_to_ptr.vmem [resolvable:$true] %s352
          %s354 = sshll.u32 %s350, 4
          %s355 = int_to_ptr.hbm [resolvable:$true] %s354
          %357 = dma.vmem_to_hbm [thread:$0]  %s353, 128, %s355, %s340
        $region52: #{tpu_custom_call.1} parent=39 // pred_fallthru
          _
      $region40: #{tpu_custom_call.1} parent=5 // pred_fallthru
        _
      %p358 = scmp.le.s32.totalorder 2, %s18
      // Predicated region
      $region53: #{tpu_custom_call.1} parent=5 // pred_check
        %p359 = pneg %p358
      $region54: #{tpu_custom_call.1} parent=5 // pred_check_branch
        %361 = sbr.rel (%p359) target = $region56
      $region55: #{tpu_custom_call.1} parent=5 // pred_region
        %s362 = ssub.s32 %s18, 2
        // Predicated region
        $region57: #{tpu_custom_call.1} parent=55 // pred_check
          %p363 = pneg %p157
        $region58: #{tpu_custom_call.1} parent=55 // pred_check_branch
          %365 = sbr.rel (%p363) target = $region60
        $region59: #{tpu_custom_call.1} parent=55 // pred_region
          %s366 = sand.u32 %s142, 1
          %s367 = scalar_lea.sflag [#allocation4], %s366
          %s368 = sand.u32 %s142, 1
          %s369 = smul.addr %s368, 8
          %s370 = scalar_lea.vmem [#allocation7], %s369
          %372 = dma.done %s367, 128
        $region60: #{tpu_custom_call.1} parent=55 // pred_fallthru
          _
      $region56: #{tpu_custom_call.1} parent=5 // pred_fallthru
        _
    $region6: #{tpu_custom_call.1} parent=1 // loop_footer
      %s22 = sadd.s32 1, %s18
    $region7: #{tpu_custom_call.1} parent=1 // loop_footer_branch
      %17 = sbr.rel target = $region3
    $region8: #{tpu_custom_call.1} parent=1 // loop_exit
      _
    %373 = vsyncpa [#allocation3], 1
    %s374 = scalar_lea.sflag [#allocation3], 1
    %375 = vsyncpa %s374, 1
    %376 = vsyncpa [#allocation6], 1
    %377 = vsyncpa [#allocation4], 1
    %s378 = scalar_lea.sflag [#allocation4], 1
    %379 = vsyncpa %s378, 1

</llo_original>
